<compile_context>
chip_gen: v5e
topology: v5e:2x2
jax: 0.10.0
libtpu: 0.0.40
codegen_flags: <defaults>
</compile_context>

<pallas_src>
import functools

import jax
import jax.numpy as jnp
from jax.experimental import pallas as pl
from jax.experimental.pallas import tpu as pltpu


def _round_up(x, m):
    return ((x + m - 1) // m) * m


_VMEM_LIMIT_BYTES = 48 * 1024 * 1024  # fits v7x's 64 MiB; raises v5e/v6e scoped defaults


def _choose_block_rows(n, c, itemsize):
    # ~16 MiB per logits VMEM buffer (x2 for double buffering = 32 MiB), leaving
    # headroom under the 48 MiB scoped limit for the lane-padded (rows, 1) target
    # and weight blocks (rows*128*4 B per buffer each) and the tiny partial slab.
    per_buffer_budget = 16 * 1024 * 1024
    rows = per_buffer_budget // max(1, c * itemsize)
    rows = min(rows, 1024)                 # 512-1024 amortizes per-step grid overhead
    rows = min(rows, _round_up(n, 8))      # don't over-allocate for tiny batches
    rows = max(8, (rows // 8) * 8)         # keep a sublane multiple
    return int(rows)


def _cb_loss_kernel(logit_ref, target_ref, wrow_ref, partial_ref, *, n_rows):
    # logit_ref:   (TN, C)  native dtype (f32/bf16); C is the true class count
    # target_ref:  (TN, 1)  i32
    # wrow_ref:    (TN, 1)  f32  per-sample class weight (0 for out-of-range targets)
    # partial_ref: (1, 8, 128) f32; sublanes 0-3 carry num, sublanes 4-7 carry den
    logits = logit_ref[...].astype(jnp.float32)            # upcast in-kernel
    targets = target_ref[...]                               # (TN, 1)
    w_i = wrow_ref[...]                                     # (TN, 1)

    tn, c = logits.shape
    cls_idx = jax.lax.broadcasted_iota(jnp.int32, (tn, c), 1)
    mask = cls_idx == targets                                # (TN, C) bool (no f32 onehot)

    # Numerically stable per-row log-sum-exp; the shift m cancels in per_sample.
    m = jnp.max(logits, axis=-1, keepdims=True)              # (TN, 1)
    shifted = logits - m                                     # reused for exp and select
    lse_sh = jnp.log(jnp.sum(jnp.exp(shifted), axis=-1, keepdims=True))
    # Exact one-true-per-row select of the target's shifted logit (0 if mask all-false).
    t_sh = jnp.sum(jnp.where(mask, shifted, 0.0), axis=-1, keepdims=True)
    per_sample = lse_sh - t_sh                               # == lse - logit_target

    # Mask rows beyond the true batch size (partial last block reads garbage);
    # mask the summands themselves so NaN/Inf garbage can never propagate.
    row0 = pl.program_id(0) * tn
    row_valid = (row0 + jax.lax.broadcasted_iota(jnp.int32, (tn, 1), 0)) < n_rows
    num = jnp.sum(jnp.where(row_valid, w_i * per_sample, 0.0))
    den = jnp.sum(jnp.where(row_valid, w_i, 0.0))

    # Lane-dense partial slab via a single select on a constant iota (one full store).
    sub = jax.lax.broadcasted_iota(jnp.int32, (1, 8, 128), 1)
    partial_ref[...] = jnp.where(sub < 4, num, den)


def class_balanced_loss(logit, target, per_cls_weights, *, block_rows=None):
    n, c = logit.shape
    itemsize = jnp.dtype(logit.dtype).itemsize

    # Hoist the per-sample class-weight gather out of the kernel (tiny XLA gather).
    tgt = target.astype(jnp.int32)
    w = per_cls_weights.astype(jnp.float32)
    in_range = (tgt >= 0) & (tgt < c)
    # TODO(synk): PyTorch F.cross_entropy raises on out-of-range targets; here they
    # contribute weight 0 (skipped) instead.
    w_row = jnp.where(in_range, w[jnp.clip(tgt, 0, c - 1)], 0.0).reshape(n, 1)
    tgt2 = tgt.reshape(n, 1)

    if block_rows is None:
        block_rows = _choose_block_rows(n, c, itemsize)
    num_blocks = pl.cdiv(n, block_rows)

    kernel = functools.partial(_cb_loss_kernel, n_rows=n)

    partials = pl.pallas_call(
        kernel,
        out_shape=jax.ShapeDtypeStruct((num_blocks, 8, 128), jnp.float32),
        grid=(num_blocks,),
        in_specs=[
            # Class axis: block dim equals the full array dim -> no 128-pad needed.
            # TODO(synk): for f32 inputs on v5e, sweep pipeline_mode=pl.Buffered(3) here.
            pl.BlockSpec((block_rows, c), lambda i: (i, 0)),   # logits (native dtype)
            pl.BlockSpec((block_rows, 1), lambda i: (i, 0)),   # targets
            pl.BlockSpec((block_rows, 1), lambda i: (i, 0)),   # per-sample weights
        ],
        out_specs=pl.BlockSpec((1, 8, 128), lambda i: (i, 0, 0)),
        compiler_params=pltpu.CompilerParams(
            dimension_semantics=("parallel",),
            vmem_limit_bytes=_VMEM_LIMIT_BYTES,
        ),
        cost_estimate=pl.CostEstimate(
            flops=5 * n * c,
            transcendentals=n * c + n,
            bytes_accessed=n * c * itemsize + n * 8 + num_blocks * 8 * 128 * 4,
        ),
    )(logit, tgt2, w_row)

    num = jnp.sum(partials[:, 0, 0])
    den = jnp.sum(partials[:, 4, 0])
    return num / den  # exact divide, done once in the wrapper


def make_per_cls_weights(cls_num_list, beta=0.9999):
    # Deterministic parameter setup mirroring the PyTorch __init__ (plain JAX glue).
    cls_num = jnp.asarray(cls_num_list, dtype=jnp.float32)
    w = (1.0 - beta) / (1.0 - jnp.power(beta, cls_num))
    w = w / jnp.mean(w)
    return w


def _reference(logit, target, per_cls_weights):
    # Pure-JAX reference (matches F.cross_entropy with weight, reduction='mean').
    logp = jax.nn.log_softmax(logit.astype(jnp.float32), axis=-1)
    n = logit.shape[0]
    logp_t = logp[jnp.arange(n), target]
    w_t = per_cls_weights[target]
    return jnp.sum(w_t * (-logp_t)) / jnp.sum(w_t)


if __name__ == "__main__":
    key = jax.random.PRNGKey(0)
    k1, k2, k3, k4 = jax.random.split(key, 4)

    # Test 1: small shapes matching the module's convention (batch, num_classes).
    N, C = 8, 16
    logit = jax.random.normal(k1, (N, C), dtype=jnp.float32)
    target = jax.random.randint(k2, (N,), 0, C, dtype=jnp.int32)
    cls_num_list = [int(100 * (0.7 ** i)) + 1 for i in range(C)]
    w = make_per_cls_weights(cls_num_list, beta=0.9999)

    loss = jax.block_until_ready(class_balanced_loss(logit, target, w))
    ref = _reference(logit, target, w)
    assert jnp.allclose(loss, ref, rtol=1e-5, atol=1e-5), (loss, ref)

    # Test 2: unaligned N/C (no pads anywhere), multi-block grid, native bf16 logits.
    N2, C2 = 50, 40
    logit2 = jax.random.normal(k3, (N2, C2), dtype=jnp.float32).astype(jnp.bfloat16)
    target2 = jax.random.randint(k4, (N2,), 0, C2, dtype=jnp.int32)
    cls_num_list2 = [int(200 * (0.8 ** i)) + 1 for i in range(C2)]
    w2 = make_per_cls_weights(cls_num_list2, beta=0.9999)

    loss2 = jax.block_until_ready(
        class_balanced_loss(logit2, target2, w2, block_rows=16))
    ref2 = _reference(logit2.astype(jnp.float32), target2, w2)
    assert jnp.allclose(loss2, ref2, rtol=1e-4, atol=1e-4), (loss2, ref2)

    print("KERNEL_OK")
</pallas_src>

<mosaic_0001>
module attributes {stable_mosaic.version = 11 : i64} {
  func.func @_cb_loss_kernel(%arg0: i32, %arg1: memref<8x16xf32, #tpu.memory_space<vmem>>, %arg2: memref<8x1xi32, #tpu.memory_space<vmem>>, %arg3: memref<8x1xf32, #tpu.memory_space<vmem>>, %arg4: memref<1x8x128xf32, #tpu.memory_space<vmem>>) attributes {dimension_semantics = [#tpu.dimension_semantics<parallel>], iteration_bounds = array<i64: 1>, scalar_prefetch = 0 : i64, scratch_operands = 0 : i64, tpu.core_type = #tpu.core_type<tc>, window_params = [{transform_indices = @transform_0, window_bounds = array<i64: 8, 16>}, {transform_indices = @transform_1, window_bounds = array<i64: 8, 1>}, {transform_indices = @transform_2, window_bounds = array<i64: 8, 1>}, {transform_indices = @transform_3, window_bounds = array<i64: 1, 8, 128>}]} {
    %c0 = arith.constant 0 : index
    %c0_0 = arith.constant 0 : index
    %0 = vector.load %arg1[%c0, %c0_0] : memref<8x16xf32, #tpu.memory_space<vmem>>, vector<8x16xf32>
    %c0_1 = arith.constant 0 : index
    %c0_2 = arith.constant 0 : index
    %1 = vector.load %arg2[%c0_1, %c0_2] : memref<8x1xi32, #tpu.memory_space<vmem>>, vector<8x1xi32>
    %c0_3 = arith.constant 0 : index
    %c0_4 = arith.constant 0 : index
    %2 = vector.load %arg3[%c0_3, %c0_4] : memref<8x1xf32, #tpu.memory_space<vmem>>, vector<8x1xf32>
    %3 = tpu.iota {dimensions = array<i32: 1>} : vector<8x16xi32>
    %4 = vector.broadcast %1 : vector<8x1xi32> to vector<8x16xi32>
    %5 = arith.cmpi eq, %3, %4 : vector<8x16xi32>
    %cst = arith.constant dense<0xFF800000> : vector<8xf32>
    %6 = vector.multi_reduction <maximumf>, %0, %cst [1] : vector<8x16xf32> to vector<8xf32>
    %7 = vector.shape_cast %6 : vector<8xf32> to vector<8x1xf32>
    %8 = vector.broadcast %7 : vector<8x1xf32> to vector<8x16xf32>
    %9 = arith.subf %0, %8 : vector<8x16xf32>
    %10 = math.exp %9 : vector<8x16xf32>
    %cst_5 = arith.constant dense<0.000000e+00> : vector<8xf32>
    %11 = vector.multi_reduction <add>, %10, %cst_5 [1] : vector<8x16xf32> to vector<8xf32>
    %12 = vector.shape_cast %11 : vector<8xf32> to vector<8x1xf32>
    %13 = math.log %12 : vector<8x1xf32>
    %cst_6 = arith.constant 0.000000e+00 : f32
    %14 = vector.broadcast %cst_6 : f32 to vector<8x16xf32>
    %15 = arith.select %5, %9, %14 : vector<8x16xi1>, vector<8x16xf32>
    %cst_7 = arith.constant dense<0.000000e+00> : vector<8xf32>
    %16 = vector.multi_reduction <add>, %15, %cst_7 [1] : vector<8x16xf32> to vector<8xf32>
    %17 = vector.shape_cast %16 : vector<8xf32> to vector<8x1xf32>
    %18 = arith.subf %13, %17 : vector<8x1xf32>
    %c8_i32 = arith.constant 8 : i32
    %19 = arith.muli %arg0, %c8_i32 : i32
    %20 = tpu.iota {dimensions = array<i32: 0>} : vector<8x1xi32>
    %21 = vector.broadcast %19 : i32 to vector<8x1xi32>
    %22 = arith.addi %21, %20 : vector<8x1xi32>
    %c8_i32_8 = arith.constant 8 : i32
    %23 = vector.broadcast %c8_i32_8 : i32 to vector<8x1xi32>
    %24 = arith.cmpi slt, %22, %23 : vector<8x1xi32>
    %25 = arith.mulf %2, %18 : vector<8x1xf32>
    %cst_9 = arith.constant 0.000000e+00 : f32
    %26 = vector.broadcast %cst_9 : f32 to vector<8x1xf32>
    %27 = arith.select %24, %25, %26 : vector<8x1xi1>, vector<8x1xf32>
    %28 = vector.shape_cast %27 : vector<8x1xf32> to vector<1x8x1xf32>
    %cst_10 = arith.constant dense<0.000000e+00> : vector<1xf32>
    %29 = vector.multi_reduction <add>, %28, %cst_10 [1, 2] : vector<1x8x1xf32> to vector<1xf32>
    %30 = vector.shape_cast %29 : vector<1xf32> to vector<1x1x1xf32>
    %31 = vector.extract %30[0, 0, 0] : f32 from vector<1x1x1xf32>
    %cst_11 = arith.constant 0.000000e+00 : f32
    %32 = vector.broadcast %cst_11 : f32 to vector<8x1xf32>
    %33 = arith.select %24, %2, %32 : vector<8x1xi1>, vector<8x1xf32>
    %34 = vector.shape_cast %33 : vector<8x1xf32> to vector<1x8x1xf32>
    %cst_12 = arith.constant dense<0.000000e+00> : vector<1xf32>
    %35 = vector.multi_reduction <add>, %34, %cst_12 [1, 2] : vector<1x8x1xf32> to vector<1xf32>
    %36 = vector.shape_cast %35 : vector<1xf32> to vector<1x1x1xf32>
    %37 = vector.extract %36[0, 0, 0] : f32 from vector<1x1x1xf32>
    %38 = tpu.iota {dimensions = array<i32: 1>} : vector<1x8x128xi32>
    %c4_i32 = arith.constant 4 : i32
    %39 = vector.broadcast %c4_i32 : i32 to vector<1x8x128xi32>
    %40 = arith.cmpi slt, %38, %39 : vector<1x8x128xi32>
    %41 = vector.broadcast %31 : f32 to vector<1x8x128xf32>
    %42 = vector.broadcast %37 : f32 to vector<1x8x128xf32>
    %43 = arith.select %40, %41, %42 : vector<1x8x128xi1>, vector<1x8x128xf32>
    %c0_13 = arith.constant 0 : index
    %c0_14 = arith.constant 0 : index
    %c0_15 = arith.constant 0 : index
    %44 = vector.load %arg4[%c0_13, %c0_14, %c0_15] : memref<1x8x128xf32, #tpu.memory_space<vmem>>, vector<1x8x128xf32>
    tpu.vector_store %arg4[%c0_13, %c0_14, %c0_15], %43 {strides = array<i32>} : memref<1x8x128xf32, #tpu.memory_space<vmem>>, vector<1x8x128xf32>,
    return
  }
  func.func @transform_0(%arg0: i32) -> (i32, i32) {
    %c0_i32 = arith.constant 0 : i32
    %c0_i32_0 = arith.constant 0 : i32
    return %arg0, %c0_i32 : i32, i32
  }
  func.func @transform_1(%arg0: i32) -> (i32, i32) {
    %c0_i32 = arith.constant 0 : i32
    %c0_i32_0 = arith.constant 0 : i32
    return %arg0, %c0_i32 : i32, i32
  }
  func.func @transform_2(%arg0: i32) -> (i32, i32) {
    %c0_i32 = arith.constant 0 : i32
    %c0_i32_0 = arith.constant 0 : i32
    return %arg0, %c0_i32 : i32, i32
  }
  func.func @transform_3(%arg0: i32) -> (i32, i32, i32) {
    %c0_i32 = arith.constant 0 : i32
    %c0_i32_0 = arith.constant 0 : i32
    %c0_i32_1 = arith.constant 0 : i32
    return %arg0, %c0_i32, %c0_i32_0 : i32, i32, i32
  }
}

</mosaic_0001>

<llo_original>
// kernel: tpu_custom_call.1
$region0: #{tpu_custom_call.1}
  #allocation0 [shape = 'u32[]', space=smem, size = 0x4, offset = 0x4, fixed_abs, tag = 'smem constant byte address 0x4 - core index']
  #allocation1 [shape = 'u32[72,128]{1,0:T(1,128)}', space=vmem, size = 0x9000, scoped, tag = 'internal scratch']
  %s0 = inlined_call_operand.vmem [shape: f32[8,16], index: 0, kind: input, shape index: {}]
  %s1 = inlined_call_operand.vmem [shape: s32[8,1], index: 1, kind: input, shape index: {}]
  %s2 = inlined_call_operand.vmem [shape: f32[8,1], index: 2, kind: input, shape index: {}]
  %s3 = inlined_call_operand.hbm [shape: f32[1,8,128], index: 3, kind: output, shape index: {}]
  %s4 = sld [smem:[#allocation0]]
  $region22: #{tpu_custom_call.1} parent=0
    _
  %s6 = ssub.s32 1, %s4
  %s7 = scalar_select 0, %s6, %s4
  $region1: #{tpu_custom_call.1} parent=0
    #allocation2 [shape = 'u8[4096]{0}', space=vmem, size = 0x1000, scoped, tag = 'output window, operand 0, single buffered']
    #allocation3 [shape = 's32[1]{0}', space=sflag, size = 0x4, scoped, tag = 'scoped memory for tpu_custom_call.1']
    %8 = vsyncpa [#allocation3], 0
    // Predicated region
    $region2: #{tpu_custom_call.1} parent=1 // pred_check
      _
    $region3: #{tpu_custom_call.1} parent=1 // pred_check_branch
      %10 = sbr.rel (0) target = $region5
    $region4: #{tpu_custom_call.1} parent=1 // pred_region
      _
    $region5: #{tpu_custom_call.1} parent=1 // pred_fallthru
      _
    // Predicated region
    $region6: #{tpu_custom_call.1} parent=1 // pred_check
      _
    $region7: #{tpu_custom_call.1} parent=1 // pred_check_branch
      %12 = sbr.rel (0) target = $region9
    $region8: #{tpu_custom_call.1} parent=1 // pred_region
      _
    $region9: #{tpu_custom_call.1} parent=1 // pred_fallthru
      _
    // Predicated region
    $region10: #{tpu_custom_call.1} parent=1 // pred_check
      _
    $region11: #{tpu_custom_call.1} parent=1 // pred_check_branch
      %14 = sbr.rel (0) target = $region13
    $region12: #{tpu_custom_call.1} parent=1 // pred_region
      _
    $region13: #{tpu_custom_call.1} parent=1 // pred_fallthru
      _
    %v15 = vld [vmem:[%s0] sm:$0xff]
    %v16 = vld [vmem:[%s1] sm:$0xff]
    %v17 = vld [vmem:[%s2] sm:$0xff]
    %v18 = vlaneseq
    %v19 = vand.u32 %v18, 127
    %20 = vset.pattern.permute.xlu0 0
    %21 = vperm.xlu0 %20, %v16
    %v22 = vpop.permute.xlu0 %21
    %vm23 = vcmp.eq.s32.totalorder %v19, %v22
    %vm24 = vcmask 130048
    %v25 = vsel %vm24, %v15, -inf
    %26 = vmax.xlane.f32.xlu0 %v25
    %v27 = vpop.xlane.xlu0 %26
    %v28 = vsub.f32 %v15, %v27
    %v29 = vmul.f32 %v28, 1.442695
    %v30 = vpow.pop %v29
    %v31 = vsel %vm24, %v30, 0.0
    %32 = vadd.xlane.f32.xlu0 %v31
    %v33 = vpop.xlane.xlu0 %32
    %v34 = vlog2.pop %v33
    %v35 = vmul.f32 %v34, 0.6931472
    %v36 = vsel %vm23, %v28, 0.0
    %v37 = vsel %vm24, %v36, 0.0
    %38 = vadd.xlane.f32.xlu0 %v37
    %v39 = vpop.xlane.xlu0 %38
    %v40 = vsub.f32 %v35, %v39
    %s41 = smul.u32 0, 8
    %v42 = vlaneseq
    %v43 = vshrl.u32 %v42, 7
    %v44 = vstv %s41
    %v45 = vadd.s32 %v44, %v43
    %vm46 = vcmp.lt.s32.totalorder %v45, 8
    %v47 = vmul.f32 %v17, %v40
    %v48 = vsel %vm46, %v47, 0.0
    %vm49 = vcmask 7168
    %v50 = vsel %vm49, %v48, 0.0
    %51 = vadd.xlane.f32.xlu0 %v50
    %v52 = vpop.xlane.xlu0 %51
    %v53 = vrot.slane %v52, 4
    %v54 = vadd.f32 %v52, %v53
    %v55 = vrot.slane %v54, 2
    %v56 = vadd.f32 %v54, %v55
    %v57 = vrot.slane %v56, 1
    %v58 = vadd.f32 %v56, %v57
    %s59 = vtos %v58
    %v60 = vsel %vm46, %v17, 0.0
    %v61 = vsel %vm49, %v60, 0.0
    %62 = vadd.xlane.f32.xlu0 %v61
    %v63 = vpop.xlane.xlu0 %62
    %v64 = vrot.slane %v63, 4
    %v65 = vadd.f32 %v63, %v64
    %v66 = vrot.slane %v65, 2
    %v67 = vadd.f32 %v65, %v66
    %v68 = vrot.slane %v67, 1
    %v69 = vadd.f32 %v67, %v68
    %s70 = vtos %v69
    %vm71 = vcmp.lt.s32.totalorder %v43, 4
    %v72 = vstv %s59
    %v73 = vstv %s70
    %v74 = vsel %vm71, %v72, %v73
    %75 = vst [vmem:[#allocation2] sm:$0xff] %v74
    // Predicated region
    $region14: #{tpu_custom_call.1} parent=1 // pred_check
      _
    $region15: #{tpu_custom_call.1} parent=1 // pred_check_branch
      %77 = sbr.rel (0) target = $region17
    $region16: #{tpu_custom_call.1} parent=1 // pred_region
      %79 = vsyncadd [#allocation3], 0
      %s81 = sshll.u32 [#allocation2], 4
      %s82 = int_to_ptr.vmem [resolvable:$true] %s81
      %s83 = sshll.u32 %s3, 4
      %s84 = int_to_ptr.hbm [resolvable:$true] %s83
      %86 = dma.vmem_to_hbm [thread:$0]  %s82, 128, %s84, [#allocation3]
    $region17: #{tpu_custom_call.1} parent=1 // pred_fallthru
      _
    // Predicated region
    $region18: #{tpu_custom_call.1} parent=1 // pred_check
      _
    $region19: #{tpu_custom_call.1} parent=1 // pred_check_branch
      %88 = sbr.rel (0) target = $region21
    $region20: #{tpu_custom_call.1} parent=1 // pred_region
      %90 = dma.done [#allocation3], 128
    $region21: #{tpu_custom_call.1} parent=1 // pred_fallthru
      _
    %91 = vsyncpa [#allocation3], 1

</llo_original>
